<compile_context>
chip_gen: v7x
topology: tpu7x:2x2x1
jax: 0.10.0
libtpu: 0.0.40
codegen_flags: <defaults>
</compile_context>

<pallas_src>
import functools

import jax
import jax.numpy as jnp
from jax.experimental import pallas as pl
from jax.experimental.pallas import tpu as pltpu

REPARAM_NOISE = 1e-6


def _round_up(x, m):
    return ((x + m - 1) // m) * m


def _pad2(x, rows, cols):
    return jnp.pad(x, ((0, rows - x.shape[0]), (0, cols - x.shape[1])))


def actor_kernel(x_ref, w1_ref, b1_ref, w2_ref, b2_ref, wh_ref, bh_ref,
                 out_ref, *, action_dims):
    """Fused MLP forward for one batch tile: fc1 -> relu -> fc2 -> relu -> packed heads."""
    # State arrives in f32; cast to the (bf16/f32) matmul dtype in-kernel.
    x = x_ref[...].astype(w1_ref.dtype)

    # fc1 (MXU matmul, f32 accumulate; bias/ReLU in f32)
    h1 = jnp.dot(x, w1_ref[...], preferred_element_type=jnp.float32) + b1_ref[...]
    h1 = jnp.maximum(h1, 0.0)

    # fc2
    h2 = jnp.dot(h1.astype(w2_ref.dtype), w2_ref[...],
                 preferred_element_type=jnp.float32) + b2_ref[...]
    h2 = jnp.maximum(h2, 0.0)

    # Packed mu/sigma head: single (f2_p, head_p) matmul; mu in lanes [0:a],
    # sigma in lanes [a:2a].  Clamp only the sigma (and dead padding) lanes.
    heads = jnp.dot(h2.astype(wh_ref.dtype), wh_ref[...],
                    preferred_element_type=jnp.float32) + bh_ref[...]
    lane = jax.lax.broadcasted_iota(jnp.int32, heads.shape, 1)
    is_sigma = lane >= action_dims
    out_ref[...] = jnp.where(
        is_sigma, jnp.clip(heads, REPARAM_NOISE, 1.0), heads
    ).astype(out_ref.dtype)


def prepare_params(params, matmul_dtype=jnp.bfloat16):
    """One-time weight prep (pad to 128-lane multiples, pack heads, cast).

    Run this ONCE per parameter update, not per forward call.
    params: dict with w1 (in,f1), b1 (1,f1), w2 (f1,f2), b2 (1,f2),
            wmu (f2,a), bmu (1,a), wsg (f2,a), bsg (1,a)
    """
    in_dims, f1 = params["w1"].shape
    f2 = params["w2"].shape[1]
    a = params["wmu"].shape[1]

    f1_p = _round_up(f1, 128)
    f2_p = _round_up(f2, 128)
    head_p = _round_up(2 * a, 128)

    # Zero padding preserves the math exactly (zero weight rows/cols + zero
    # bias contribute nothing; relu(0) = 0 keeps padded hidden lanes at zero).
    w1 = _pad2(params["w1"], in_dims, f1_p).astype(matmul_dtype)
    b1 = _pad2(params["b1"], 1, f1_p).astype(jnp.float32)
    w2 = _pad2(params["w2"], f1_p, f2_p).astype(matmul_dtype)
    b2 = _pad2(params["b2"], 1, f2_p).astype(jnp.float32)

    wh = jnp.zeros((f2_p, head_p), matmul_dtype)
    wh = wh.at[:f2, :a].set(params["wmu"].astype(matmul_dtype))
    wh = wh.at[:f2, a:2 * a].set(params["wsg"].astype(matmul_dtype))
    bh = jnp.zeros((1, head_p), jnp.float32)
    bh = bh.at[:, :a].set(params["bmu"].astype(jnp.float32))
    bh = bh.at[:, a:2 * a].set(params["bsg"].astype(jnp.float32))

    return dict(w1=w1, b1=b1, w2=w2, b2=b2, wh=wh, bh=bh)


@functools.partial(jax.jit,
                   static_argnames=("action_dims", "block_b", "min_grid_steps"))
def actor_forward(state, prep, action_dims, block_b=1024, min_grid_steps=1):
    """Fused ActorNetwork forward on TPU via pallas_call.

    state: (B, in_dims) float32 (feature dim is NOT padded).
    prep:  output of prepare_params (pre-padded, pre-cast weights).
    action_dims: static number of actions.
    min_grid_steps: use 2 on v7x so both TensorCores get a batch tile.
    Returns mu (B, a) f32, sigma (B, a) f32.
    """
    B, in_dims = state.shape
    w1, b1, w2, b2, wh, bh = (prep["w1"], prep["b1"], prep["w2"],
                              prep["b2"], prep["wh"], prep["bh"])
    assert w1.shape[0] == in_dims, "prep params do not match state feature dim"
    f1_p = w1.shape[1]
    f2_p = w2.shape[1]
    head_p = wh.shape[1]

    # Batch tile: one grid step for small/medium batches (single-TC v5e/v6e);
    # large batches use block_b-sized tiles to amortize per-step overhead.
    bb = min(block_b, _round_up(max(pl.cdiv(B, min_grid_steps), 8), 8))
    B_p = _round_up(B, bb)
    grid = (B_p // bb,)

    # Only batch-pad the state if needed (no feature-dim padding, no cast).
    state_p = state if B_p == B else jnp.pad(state, ((0, B_p - B), (0, 0)))

    # Weights/biases are small: each grid step sees the full tensor (resident).
    def full_spec(arr):
        n = arr.ndim
        return pl.BlockSpec(arr.shape, lambda i: (0,) * n)

    kernel = functools.partial(actor_kernel, action_dims=action_dims)

    flops = 2 * B_p * (in_dims * f1_p + f1_p * f2_p + f2_p * head_p)
    bytes_accessed = (
        state_p.size * state_p.dtype.itemsize
        + sum(v.size * v.dtype.itemsize for v in (w1, b1, w2, b2, wh, bh))
        + B_p * head_p * 4)

    out = pl.pallas_call(
        kernel,
        out_shape=jax.ShapeDtypeStruct((B_p, head_p), jnp.float32),
        grid_spec=pltpu.PrefetchScalarGridSpec(
            num_scalar_prefetch=0,
            grid=grid,
            in_specs=[
                pl.BlockSpec((bb, in_dims), lambda i: (i, 0)),  # state tile (full feat dim)
                full_spec(w1), full_spec(b1),                   # fc1
                full_spec(w2), full_spec(b2),                   # fc2
                full_spec(wh), full_spec(bh),                   # packed mu/sigma head
            ],
            out_specs=pl.BlockSpec((bb, head_p), lambda i: (i, 0)),  # lane-dense slab
        ),
        compiler_params=pltpu.CompilerParams(
            dimension_semantics=("parallel",),
        ),
        cost_estimate=pl.CostEstimate(
            flops=flops, transcendentals=0, bytes_accessed=bytes_accessed),
    )(state_p, w1, b1, w2, b2, wh, bh)

    mu = out[:B, :action_dims]
    sigma = out[:B, action_dims:2 * action_dims]
    return mu, sigma


def init_params(key, in_dims, f1, f2, a):
    """PyTorch-Linear-style init: U(-1/sqrt(fan_in), 1/sqrt(fan_in))."""
    ks = jax.random.split(key, 8)

    def lin(kw, kb, fan_in, fan_out):
        bound = 1.0 / jnp.sqrt(jnp.float32(fan_in))
        w = jax.random.uniform(kw, (fan_in, fan_out), jnp.float32, -bound, bound)
        b = jax.random.uniform(kb, (1, fan_out), jnp.float32, -bound, bound)
        return w, b

    w1, b1 = lin(ks[0], ks[1], in_dims, f1)
    w2, b2 = lin(ks[2], ks[3], f1, f2)
    wmu, bmu = lin(ks[4], ks[5], f2, a)
    wsg, bsg = lin(ks[6], ks[7], f2, a)
    return dict(w1=w1, b1=b1, w2=w2, b2=b2, wmu=wmu, bmu=bmu, wsg=wsg, bsg=bsg)


def reference_forward(state, p):
    """Pure-JAX reference of ActorNetwork.forward."""
    h1 = jnp.maximum(state @ p["w1"] + p["b1"], 0.0)
    h2 = jnp.maximum(h1 @ p["w2"] + p["b2"], 0.0)
    mu = h2 @ p["wmu"] + p["bmu"]
    sigma = jnp.clip(h2 @ p["wsg"] + p["bsg"], REPARAM_NOISE, 1.0)
    return mu, sigma


# TODO(synk): sample_normal (Normal rsample, tanh squash, log_prob) and the
# Adam optimizer / checkpoint save-load are host-side / stochastic and not
# part of this forward kernel.

if __name__ == "__main__":
    # Module defaults: fc1_dims = fc2_dims = 256, action_dims = 1; small
    # 8-dim observation, small batch of 32 (single grid step).
    batch, in_dims, f1, f2, a = 32, 8, 256, 256, 1

    key = jax.random.PRNGKey(0)
    k_state, k_params = jax.random.split(key)

    state = jax.random.normal(k_state, (batch, in_dims), jnp.float32)
    params = init_params(k_params, in_dims, f1, f2, a)

    mu_ref, sigma_ref = reference_forward(state, params)

    # f32-matmul path: tight semantic check.
    prep32 = prepare_params(params, matmul_dtype=jnp.float32)
    mu32, sg32 = actor_forward(state, prep32, action_dims=a)
    jax.block_until_ready((mu32, sg32))
    assert mu32.shape == (batch, a) and sg32.shape == (batch, a)
    assert jnp.allclose(mu32, mu_ref, atol=1e-4, rtol=1e-4)
    assert jnp.allclose(sg32, sigma_ref, atol=1e-4, rtol=1e-4)
    assert bool(jnp.all(sg32 >= REPARAM_NOISE)) and bool(jnp.all(sg32 <= 1.0))

    # bf16-matmul path (production default on every TPU generation): loose check.
    prep16 = prepare_params(params, matmul_dtype=jnp.bfloat16)
    mu16, sg16 = actor_forward(state, prep16, action_dims=a)
    jax.block_until_ready((mu16, sg16))
    assert mu16.shape == (batch, a) and sg16.shape == (batch, a)
    assert jnp.allclose(mu16, mu_ref, atol=5e-2, rtol=5e-2)
    assert jnp.allclose(sg16, sigma_ref, atol=5e-2, rtol=5e-2)
    assert bool(jnp.all(sg16 >= REPARAM_NOISE)) and bool(jnp.all(sg16 <= 1.0))

    # Multi-step grid path (what you'd use on v7x with min_grid_steps=2):
    mu2, sg2 = actor_forward(state, prep16, action_dims=a, min_grid_steps=2)
    jax.block_until_ready((mu2, sg2))
    assert jnp.allclose(mu2, mu_ref, atol=5e-2, rtol=5e-2)
    assert jnp.allclose(sg2, sigma_ref, atol=5e-2, rtol=5e-2)

    print("KERNEL_OK")
</pallas_src>

<mosaic_0001>
module attributes {stable_mosaic.version = 11 : i64} {
  func.func @actor_kernel(%arg0: i32, %arg1: memref<32x8xf32, #tpu.memory_space<vmem>>, %arg2: memref<8x256xf32, #tpu.memory_space<vmem>>, %arg3: memref<1x256xf32, #tpu.memory_space<vmem>>, %arg4: memref<256x256xf32, #tpu.memory_space<vmem>>, %arg5: memref<1x256xf32, #tpu.memory_space<vmem>>, %arg6: memref<256x128xf32, #tpu.memory_space<vmem>>, %arg7: memref<1x128xf32, #tpu.memory_space<vmem>>, %arg8: memref<32x128xf32, #tpu.memory_space<vmem>>) attributes {dimension_semantics = [#tpu.dimension_semantics<parallel>], iteration_bounds = array<i64: 1>, scalar_prefetch = 0 : i64, scratch_operands = 0 : i64, tpu.core_type = #tpu.core_type<tc>, window_params = [{transform_indices = @transform_0, window_bounds = array<i64: 32, 8>}, {pipeline_mode = #tpu.pipeline_mode<synchronous>, transform_indices = @transform_1, window_bounds = array<i64: 8, 256>}, {pipeline_mode = #tpu.pipeline_mode<synchronous>, transform_indices = @transform_2, window_bounds = array<i64: 1, 256>}, {pipeline_mode = #tpu.pipeline_mode<synchronous>, transform_indices = @transform_3, window_bounds = array<i64: 256, 256>}, {pipeline_mode = #tpu.pipeline_mode<synchronous>, transform_indices = @transform_4, window_bounds = array<i64: 1, 256>}, {pipeline_mode = #tpu.pipeline_mode<synchronous>, transform_indices = @transform_5, window_bounds = array<i64: 256, 128>}, {pipeline_mode = #tpu.pipeline_mode<synchronous>, transform_indices = @transform_6, window_bounds = array<i64: 1, 128>}, {transform_indices = @transform_7, window_bounds = array<i64: 32, 128>}]} {
    %c0 = arith.constant 0 : index
    %c0_0 = arith.constant 0 : index
    %0 = vector.load %arg1[%c0, %c0_0] : memref<32x8xf32, #tpu.memory_space<vmem>>, vector<32x8xf32>
    %c0_1 = arith.constant 0 : index
    %c0_2 = arith.constant 0 : index
    %1 = vector.load %arg2[%c0_1, %c0_2] : memref<8x256xf32, #tpu.memory_space<vmem>>, vector<8x256xf32>
    %cst = arith.constant dense<0.000000e+00> : vector<32x256xf32>
    %2 = tpu.matmul %0, %1, %cst {dimension_numbers = #tpu.dot_dimension_numbers<[1], [0], [0], [1], [0, 0, 1, 1], [], []>} : vector<32x8xf32>, vector<8x256xf32>, vector<32x256xf32> -> vector<32x256xf32>
    %c0_3 = arith.constant 0 : index
    %c0_4 = arith.constant 0 : index
    %3 = vector.load %arg3[%c0_3, %c0_4] : memref<1x256xf32, #tpu.memory_space<vmem>>, vector<1x256xf32>
    %4 = vector.broadcast %3 : vector<1x256xf32> to vector<32x256xf32>
    %5 = arith.addf %2, %4 : vector<32x256xf32>
    %cst_5 = arith.constant 0.000000e+00 : f32
    %6 = vector.broadcast %cst_5 : f32 to vector<32x256xf32>
    %7 = arith.maximumf %5, %6 : vector<32x256xf32>
    %c0_6 = arith.constant 0 : index
    %c0_7 = arith.constant 0 : index
    %8 = vector.load %arg4[%c0_6, %c0_7] : memref<256x256xf32, #tpu.memory_space<vmem>>, vector<256x256xf32>
    %cst_8 = arith.constant dense<0.000000e+00> : vector<32x256xf32>
    %9 = tpu.matmul %7, %8, %cst_8 {dimension_numbers = #tpu.dot_dimension_numbers<[1], [0], [0], [1], [0, 0, 1, 1], [], []>} : vector<32x256xf32>, vector<256x256xf32>, vector<32x256xf32> -> vector<32x256xf32>
    %c0_9 = arith.constant 0 : index
    %c0_10 = arith.constant 0 : index
    %10 = vector.load %arg5[%c0_9, %c0_10] : memref<1x256xf32, #tpu.memory_space<vmem>>, vector<1x256xf32>
    %11 = vector.broadcast %10 : vector<1x256xf32> to vector<32x256xf32>
    %12 = arith.addf %9, %11 : vector<32x256xf32>
    %cst_11 = arith.constant 0.000000e+00 : f32
    %13 = vector.broadcast %cst_11 : f32 to vector<32x256xf32>
    %14 = arith.maximumf %12, %13 : vector<32x256xf32>
    %c0_12 = arith.constant 0 : index
    %c0_13 = arith.constant 0 : index
    %15 = vector.load %arg6[%c0_12, %c0_13] : memref<256x128xf32, #tpu.memory_space<vmem>>, vector<256x128xf32>
    %cst_14 = arith.constant dense<0.000000e+00> : vector<32x128xf32>
    %16 = tpu.matmul %14, %15, %cst_14 {dimension_numbers = #tpu.dot_dimension_numbers<[1], [0], [0], [1], [0, 0, 1, 1], [], []>} : vector<32x256xf32>, vector<256x128xf32>, vector<32x128xf32> -> vector<32x128xf32>
    %c0_15 = arith.constant 0 : index
    %c0_16 = arith.constant 0 : index
    %17 = vector.load %arg7[%c0_15, %c0_16] : memref<1x128xf32, #tpu.memory_space<vmem>>, vector<1x128xf32>
    %18 = vector.broadcast %17 : vector<1x128xf32> to vector<32x128xf32>
    %19 = arith.addf %16, %18 : vector<32x128xf32>
    %20 = tpu.iota {dimensions = array<i32: 1>} : vector<32x128xi32>
    %c1_i32 = arith.constant 1 : i32
    %21 = vector.broadcast %c1_i32 : i32 to vector<32x128xi32>
    %22 = arith.cmpi sge, %20, %21 : vector<32x128xi32>
    %cst_17 = arith.constant 9.99999997E-7 : f32
    %cst_18 = arith.constant 1.000000e+00 : f32
    %23 = vector.broadcast %cst_17 : f32 to vector<32x128xf32>
    %24 = arith.maximumf %23, %19 : vector<32x128xf32>
    %25 = vector.broadcast %cst_18 : f32 to vector<32x128xf32>
    %26 = arith.minimumf %25, %24 : vector<32x128xf32>
    %27 = arith.select %22, %26, %19 : vector<32x128xi1>, vector<32x128xf32>
    %c0_19 = arith.constant 0 : index
    %c0_20 = arith.constant 0 : index
    %28 = vector.load %arg8[%c0_19, %c0_20] : memref<32x128xf32, #tpu.memory_space<vmem>>, vector<32x128xf32>
    tpu.vector_store %arg8[%c0_19, %c0_20], %27 {strides = array<i32>} : memref<32x128xf32, #tpu.memory_space<vmem>>, vector<32x128xf32>,
    return
  }
  func.func @transform_0(%arg0: i32) -> (i32, i32) {
    %c0_i32 = arith.constant 0 : i32
    %c0_i32_0 = arith.constant 0 : i32
    return %arg0, %c0_i32 : i32, i32
  }
  func.func @transform_1(%arg0: i32) -> (i32, i32) {
    %c0_i32 = arith.constant 0 : i32
    %c0_i32_0 = arith.constant 0 : i32
    %c0_i32_1 = arith.constant 0 : i32
    return %c0_i32, %c0_i32_0 : i32, i32
  }
  func.func @transform_2(%arg0: i32) -> (i32, i32) {
    %c0_i32 = arith.constant 0 : i32
    %c0_i32_0 = arith.constant 0 : i32
    %c0_i32_1 = arith.constant 0 : i32
    return %c0_i32, %c0_i32_0 : i32, i32
  }
  func.func @transform_3(%arg0: i32) -> (i32, i32) {
    %c0_i32 = arith.constant 0 : i32
    %c0_i32_0 = arith.constant 0 : i32
    %c0_i32_1 = arith.constant 0 : i32
    return %c0_i32, %c0_i32_0 : i32, i32
  }
  func.func @transform_4(%arg0: i32) -> (i32, i32) {
    %c0_i32 = arith.constant 0 : i32
    %c0_i32_0 = arith.constant 0 : i32
    %c0_i32_1 = arith.constant 0 : i32
    return %c0_i32, %c0_i32_0 : i32, i32
  }
  func.func @transform_5(%arg0: i32) -> (i32, i32) {
    %c0_i32 = arith.constant 0 : i32
    %c0_i32_0 = arith.constant 0 : i32
    %c0_i32_1 = arith.constant 0 : i32
    return %c0_i32, %c0_i32_0 : i32, i32
  }
  func.func @transform_6(%arg0: i32) -> (i32, i32) {
    %c0_i32 = arith.constant 0 : i32
    %c0_i32_0 = arith.constant 0 : i32
    %c0_i32_1 = arith.constant 0 : i32
    return %c0_i32, %c0_i32_0 : i32, i32
  }
  func.func @transform_7(%arg0: i32) -> (i32, i32) {
    %c0_i32 = arith.constant 0 : i32
    %c0_i32_0 = arith.constant 0 : i32
    return %arg0, %c0_i32 : i32, i32
  }
}

</mosaic_0001>

<llo_original>
// kernel: actor_forward.1
$region0: #{actor_forward.1}
  #allocation0 [shape = 'u32[]', space=smem, size = 0x4, offset = 0x4, fixed_abs, tag = 'smem constant byte address 0x4 - core index']
  #allocation1 [shape = 'u32[144,128]{1,0:T(1,128)}', space=vmem, size = 0x12000, scoped, tag = 'internal scratch']
  %s0 = inlined_call_operand.vmem [shape: f32[32,8], index: 0, kind: input, shape index: {}]
  %s1 = inlined_call_operand.vmem [shape: f32[8,256], index: 1, kind: input, shape index: {}]
  %s2 = inlined_call_operand.vmem [shape: f32[1,256], index: 2, kind: input, shape index: {}]
  %s3 = inlined_call_operand.hbm [shape: f32[256,256], index: 3, kind: input, shape index: {}]
  %s4 = inlined_call_operand.vmem [shape: f32[1,256], index: 4, kind: input, shape index: {}]
  %s5 = inlined_call_operand.hbm [shape: f32[256,128], index: 5, kind: input, shape index: {}]
  %s6 = inlined_call_operand.vmem [shape: f32[1,128], index: 6, kind: input, shape index: {}]
  %s7 = inlined_call_operand.vmem [shape: f32[32,128], index: 7, kind: output, shape index: {}]
  %s8 = sld [smem:[#allocation0]]
  $region46: #{actor_forward.1} parent=0
    _
  %s10 = ssub.s32 1, %s8
  %s11 = scalar_select 0, %s10, %s8
  $region1: #{actor_forward.1} parent=0
    #allocation2 [shape = 'u8[262144]{0}', space=vmem, size = 0x40000, scoped, tag = 'input window, operand 3, single buffered']
    #allocation3 [shape = 's32[1]{0}', space=sflag, size = 0x4, scoped, tag = 'scoped memory for actor_forward.1']
    #allocation4 [shape = 'u8[131072]{0}', space=vmem, size = 0x20000, scoped, tag = 'input window, operand 5, single buffered']
    #allocation5 [shape = 's32[1]{0}', space=sflag, size = 0x4, scoped, tag = 'scoped memory for actor_forward.1']
    %12 = vsyncpa [#allocation3], 0
    %13 = vsyncpa [#allocation5], 0
    // Predicated region
    $region2: #{actor_forward.1} parent=1 // pred_check
      _
    $region3: #{actor_forward.1} parent=1 // pred_check_branch
      %15 = sbr.rel (0) target = $region5
    $region4: #{actor_forward.1} parent=1 // pred_region
      _
    $region5: #{actor_forward.1} parent=1 // pred_fallthru
      _
    // Predicated region
    $region6: #{actor_forward.1} parent=1 // pred_check
      _
    $region7: #{actor_forward.1} parent=1 // pred_check_branch
      %17 = sbr.rel (0) target = $region9
    $region8: #{actor_forward.1} parent=1 // pred_region
      _
    $region9: #{actor_forward.1} parent=1 // pred_fallthru
      _
    // Predicated region
    $region10: #{actor_forward.1} parent=1 // pred_check
      _
    $region11: #{actor_forward.1} parent=1 // pred_check_branch
      %19 = sbr.rel (0) target = $region13
    $region12: #{actor_forward.1} parent=1 // pred_region
      _
    $region13: #{actor_forward.1} parent=1 // pred_fallthru
      _
    // Predicated region
    $region14: #{actor_forward.1} parent=1 // pred_check
      _
    $region15: #{actor_forward.1} parent=1 // pred_check_branch
      %21 = sbr.rel (0) target = $region17
    $region16: #{actor_forward.1} parent=1 // pred_region
      %s23 = ssub.s32 8192, 8192
      %24 = vsyncadd [#allocation3], %s23
      %s25 = sshll.u32 [#allocation2], 4
      %s26 = int_to_ptr.vmem [resolvable:$true] %s25
      %31 = dma.hbm_to_vmem [thread:$0]  %s3, 8192, %s26, [#allocation3], 256, 256, 16
    $region17: #{actor_forward.1} parent=1 // pred_fallthru
      _
    // Predicated region
    $region18: #{actor_forward.1} parent=1 // pred_check
      _
    $region19: #{actor_forward.1} parent=1 // pred_check_branch
      %33 = sbr.rel (0) target = $region21
    $region20: #{actor_forward.1} parent=1 // pred_region
      _
    $region21: #{actor_forward.1} parent=1 // pred_fallthru
      _
    // Predicated region
    $region22: #{actor_forward.1} parent=1 // pred_check
      _
    $region23: #{actor_forward.1} parent=1 // pred_check_branch
      %35 = sbr.rel (0) target = $region25
    $region24: #{actor_forward.1} parent=1 // pred_region
      %s37 = ssub.s32 4096, 4096
      %38 = vsyncadd [#allocation5], %s37
      %s39 = sshll.u32 [#allocation4], 4
      %s40 = int_to_ptr.vmem [resolvable:$true] %s39
      %45 = dma.hbm_to_vmem [thread:$0]  %s5, 4096, %s40, [#allocation5], 128, 128, 8
    $region25: #{actor_forward.1} parent=1 // pred_fallthru
      _
    // Predicated region
    $region26: #{actor_forward.1} parent=1 // pred_check
      _
    $region27: #{actor_forward.1} parent=1 // pred_check_branch
      %47 = sbr.rel (0) target = $region29
    $region28: #{actor_forward.1} parent=1 // pred_region
      _
    $region29: #{actor_forward.1} parent=1 // pred_fallthru
      _
    // Predicated region
    $region30: #{actor_forward.1} parent=1 // pred_check
      _
    $region31: #{actor_forward.1} parent=1 // pred_check_branch
      %49 = sbr.rel (0) target = $region33
    $region32: #{actor_forward.1} parent=1 // pred_region
      %50 = dma.done [#allocation3], 8192
    $region33: #{actor_forward.1} parent=1 // pred_fallthru
      _
    // Predicated region
    $region34: #{actor_forward.1} parent=1 // pred_check
      _
    $region35: #{actor_forward.1} parent=1 // pred_check_branch
      %52 = sbr.rel (0) target = $region37
    $region36: #{actor_forward.1} parent=1 // pred_region
      %53 = dma.done [#allocation5], 4096
    $region37: #{actor_forward.1} parent=1 // pred_fallthru
      _
    %v54 = vld [vmem:[%s0] sm:$0xff]
    %v55 = vld [vmem:[%s0 + $0x8] sm:$0xff]
    %v56 = vld [vmem:[%s0 + $0x10] sm:$0xff]
    %v57 = vld [vmem:[%s0 + $0x18] sm:$0xff]
    %v58 = vld [vmem:[%s1] sm:$0xff]
    %v59 = vld [vmem:[%s1 + $0x8] sm:$0xff]
    %v60 = vld [vmem:[%s2] sm:$0x3]
    %v62 = vlaneseq
    %v63 = vshrl.u32 %v62, 7
    %v64 = vsub.s32 0, %v63
    %v65 = vrot.slane %v60, %v64
    %v66 = vlaneseq
    %v67 = vshrl.u32 %v66, 7
    %v68 = vsub.s32 1, %v67
    %v69 = vrot.slane %v60, %v68
    %vm72 = vcmask 64512
    %v74 = vsel %vm72, %v54, 0
    %v77 = vsel %vm72, %v55, 0
    %v80 = vsel %vm72, %v56, 0
    %v83 = vsel %vm72, %v57, 0
    %85 = vmatprep.subr.mxu0 %v59
    %86 = vmatpush1.msra.mxu0 %v58
    %87 = vmatprep.subr.mxu0 0.0
    %88 = vmatpush1.msra.mxu0 0.0
    %89 = vmatprep.subr.mxu0 0.0
    %90 = vmatpush1.msra.mxu0 0.0
    %91 = vmatprep.subr.mxu0 0.0
    %92 = vmatpush1.msra.mxu0 0.0
    %93 = vmatprep.subr.mxu0 0.0
    %94 = vmatpush1.msra.mxu0 0.0
    %95 = vmatprep.subr.mxu0 0.0
    %96 = vmatpush1.msra.mxu0 0.0
    %97 = vmatprep.subr.mxu0 0.0
    %98 = vmatpush1.msra.mxu0 0.0
    %99 = vmatprep.subr.mxu0 0.0
    %100 = vmatpush1.msra.mxu0 0.0
    %101 = vmatprep.subr.mxu0 0.0
    %102 = vmatpush1.msra.mxu0 0.0
    %103 = vmatprep.subr.mxu0 0.0
    %104 = vmatpush1.msra.mxu0 0.0
    %105 = vmatprep.subr.mxu0 0.0
    %106 = vmatpush1.msra.mxu0 0.0
    %107 = vmatprep.subr.mxu0 0.0
    %108 = vmatpush1.msra.mxu0 0.0
    %109 = vmatprep.subr.mxu0 0.0
    %110 = vmatpush1.msra.mxu0 0.0
    %111 = vmatprep.subr.mxu0 0.0
    %112 = vmatpush1.msra.mxu0 0.0
    %113 = vmatprep.subr.mxu0 0.0
    %114 = vmatpush1.msra.mxu0 0.0
    %115 = vmatprep.subr.mxu0 0.0
    %116 = vmatpush1.msra.mxu0 0.0
    %117 = vmatprep.subr.mxu0 0.0
    %118 = vmatpush1.msra.mxu0 0.0
    %119 = vmatprep.subr.mxu0 0.0
    %120 = vmatpush1.msra.mxu0 0.0
    %121 = vmatprep.subr.mxu0 0.0
    %122 = vmatpush1.msra.mxu0 0.0
    %123 = vmatprep.subr.mxu0 0.0
    %124 = vmatpush1.msra.mxu0 0.0
    %125 = vmatprep.subr.mxu0 0.0
    %126 = vmatpush1.msra.mxu0 0.0
    %127 = vmatprep.subr.mxu0 0.0
    %128 = vmatpush1.msra.mxu0 0.0
    %129 = vmatprep.subr.mxu0 0.0
    %130 = vmatpush1.msra.mxu0 0.0
    %131 = vmatprep.subr.mxu0 0.0
    %132 = vmatpush1.msra.mxu0 0.0
    %133 = vmatprep.subr.mxu0 0.0
    %134 = vmatpush1.msra.mxu0 0.0
    %135 = vmatprep.subr.mxu0 0.0
    %136 = vmatpush1.msra.mxu0 0.0
    %137 = vmatprep.subr.mxu0 0.0
    %138 = vmatpush1.msra.mxu0 0.0
    %139 = vmatprep.subr.mxu0 0.0
    %140 = vmatpush1.msra.mxu0 0.0
    %141 = vmatprep.subr.mxu0 0.0
    %142 = vmatpush1.msra.mxu0 0.0
    %143 = vmatprep.subr.mxu0 0.0
    %144 = vmatpush1.msra.mxu0 0.0
    %145 = vmatprep.subr.mxu0 0.0
    %146 = vmatpush1.msra.mxu0 0.0
    %147 = vmatprep.subr.mxu0 0.0
    %148 = vmatpush1.msra.mxu0 0.0
    %149 = vmatprep.mubr.f32.mxu0 0.0
    %150 = vmatmul.mubr.f32.gmra.mrb[0].mxu0 %v74
    %v151 = vpop.f32.mrb[0].mxu0
    %v152 = vadd.f32 %v65, %v151
    %v153 = vpop.f32.mrb[0].mxu0
    %v154 = vadd.f32 %v69, %v153
    %155 = vmatprep.mubr.f32.mxu0 0.0
    %156 = vmatmul.mubr.f32.gmra.mrb[0].mxu0 %v77
    %v157 = vpop.f32.mrb[0].mxu0
    %v158 = vadd.f32 %v65, %v157
    %v159 = vpop.f32.mrb[0].mxu0
    %v160 = vadd.f32 %v69, %v159
    %161 = vmatprep.mubr.f32.mxu0 0.0
    %162 = vmatmul.mubr.f32.gmra.mrb[0].mxu0 %v80
    %v163 = vpop.f32.mrb[0].mxu0
    %v164 = vadd.f32 %v65, %v163
    %v165 = vpop.f32.mrb[0].mxu0
    %v166 = vadd.f32 %v69, %v165
    %167 = vmatprep.mubr.f32.mxu0 0.0
    %168 = vmatmul.mubr.f32.gmra.mrb[0].mxu0 %v83
    %v169 = vpop.f32.mrb[0].mxu0
    %v170 = vadd.f32 %v65, %v169
    %v171 = vpop.f32.mrb[0].mxu0
    %v172 = vadd.f32 %v69, %v171
    %173 = vdwg.mxu0
    %v174 = vmax.f32 %v152, 0.0
    %v175 = vmax.f32 %v154, 0.0
    %v176 = vmax.f32 %v158, 0.0
    %v177 = vmax.f32 %v160, 0.0
    %v178 = vmax.f32 %v164, 0.0
    %v179 = vmax.f32 %v166, 0.0
    %v180 = vmax.f32 %v170, 0.0
    %v181 = vmax.f32 %v172, 0.0
    %v182 = vld [vmem:[#allocation2] sm:$0xff]
    %v183 = vld [vmem:[#allocation2 + $0x8] sm:$0xff]
    %v184 = vld [vmem:[#allocation2 + $0x10] sm:$0xff]
    %v185 = vld [vmem:[#allocation2 + $0x18] sm:$0xff]
    %v186 = vld [vmem:[#allocation2 + $0x20] sm:$0xff]
    %v187 = vld [vmem:[#allocation2 + $0x28] sm:$0xff]
    %v188 = vld [vmem:[#allocation2 + $0x30] sm:$0xff]
    %v189 = vld [vmem:[#allocation2 + $0x38] sm:$0xff]
    %v190 = vld [vmem:[#allocation2 + $0x40] sm:$0xff]
    %v191 = vld [vmem:[#allocation2 + $0x48] sm:$0xff]
    %v192 = vld [vmem:[#allocation2 + $0x50] sm:$0xff]
    %v193 = vld [vmem:[#allocation2 + $0x58] sm:$0xff]
    %v194 = vld [vmem:[#allocation2 + $0x60] sm:$0xff]
    %v195 = vld [vmem:[#allocation2 + $0x68] sm:$0xff]
    %v196 = vld [vmem:[#allocation2 + $0x70] sm:$0xff]
    %v197 = vld [vmem:[#allocation2 + $0x78] sm:$0xff]
    %v198 = vld [vmem:[#allocation2 + $0x80] sm:$0xff]
    %v199 = vld [vmem:[#allocation2 + $0x88] sm:$0xff]
    %v200 = vld [vmem:[#allocation2 + $0x90] sm:$0xff]
    %v201 = vld [vmem:[#allocation2 + $0x98] sm:$0xff]
    %v202 = vld [vmem:[#allocation2 + $0xa0] sm:$0xff]
    %v203 = vld [vmem:[#allocation2 + $0xa8] sm:$0xff]
    %v204 = vld [vmem:[#allocation2 + $0xb0] sm:$0xff]
    %v205 = vld [vmem:[#allocation2 + $0xb8] sm:$0xff]
    %v206 = vld [vmem:[#allocation2 + $0xc0] sm:$0xff]
    %v207 = vld [vmem:[#allocation2 + $0xc8] sm:$0xff]
    %v208 = vld [vmem:[#allocation2 + $0xd0] sm:$0xff]
    %v209 = vld [vmem:[#allocation2 + $0xd8] sm:$0xff]
    %v210 = vld [vmem:[#allocation2 + $0xe0] sm:$0xff]
    %v211 = vld [vmem:[#allocation2 + $0xe8] sm:$0xff]
    %v212 = vld [vmem:[#allocation2 + $0xf0] sm:$0xff]
    %v213 = vld [vmem:[#allocation2 + $0xf8] sm:$0xff]
    %v214 = vld [vmem:[#allocation2 + $0x100] sm:$0xff]
    %v215 = vld [vmem:[#allocation2 + $0x108] sm:$0xff]
    %v216 = vld [vmem:[#allocation2 + $0x110] sm:$0xff]
    %v217 = vld [vmem:[#allocation2 + $0x118] sm:$0xff]
    %v218 = vld [vmem:[#allocation2 + $0x120] sm:$0xff]
    %v219 = vld [vmem:[#allocation2 + $0x128] sm:$0xff]
    %v220 = vld [vmem:[#allocation2 + $0x130] sm:$0xff]
    %v221 = vld [vmem:[#allocation2 + $0x138] sm:$0xff]
    %v222 = vld [vmem:[#allocation2 + $0x140] sm:$0xff]
    %v223 = vld [vmem:[#allocation2 + $0x148] sm:$0xff]
    %v224 = vld [vmem:[#allocation2 + $0x150] sm:$0xff]
    %v225 = vld [vmem:[#allocation2 + $0x158] sm:$0xff]
    %v226 = vld [vmem:[#allocation2 + $0x160] sm:$0xff]
    %v227 = vld [vmem:[#allocation2 + $0x168] sm:$0xff]
    %v228 = vld [vmem:[#allocation2 + $0x170] sm:$0xff]
    %v229 = vld [vmem:[#allocation2 + $0x178] sm:$0xff]
    %v230 = vld [vmem:[#allocation2 + $0x180] sm:$0xff]
    %v231 = vld [vmem:[#allocation2 + $0x188] sm:$0xff]
    %v232 = vld [vmem:[#allocation2 + $0x190] sm:$0xff]
    %v233 = vld [vmem:[#allocation2 + $0x198] sm:$0xff]
    %v234 = vld [vmem:[#allocation2 + $0x1a0] sm:$0xff]
    %v235 = vld [vmem:[#allocation2 + $0x1a8] sm:$0xff]
    %v236 = vld [vmem:[#allocation2 + $0x1b0] sm:$0xff]
    %v237 = vld [vmem:[#allocation2 + $0x1b8] sm:$0xff]
    %v238 = vld [vmem:[#allocation2 + $0x1c0] sm:$0xff]
    %v239 = vld [vmem:[#allocation2 + $0x1c8] sm:$0xff]
    %v240 = vld [vmem:[#allocation2 + $0x1d0] sm:$0xff]
    %v241 = vld [vmem:[#allocation2 + $0x1d8] sm:$0xff]
    %v242 = vld [vmem:[#allocation2 + $0x1e0] sm:$0xff]
    %v243 = vld [vmem:[#allocation2 + $0x1e8] sm:$0xff]
    %v244 = vld [vmem:[#allocation2 + $0x1f0] sm:$0xff]
    %v245 = vld [vmem:[#allocation2 + $0x1f8] sm:$0xff]
    %v246 = vld [vmem:[%s4] sm:$0x3]
    %v248 = vlaneseq
    %v249 = vshrl.u32 %v248, 7
    %v250 = vsub.s32 0, %v249
    %v251 = vrot.slane %v246, %v250
    %v252 = vlaneseq
    %v253 = vshrl.u32 %v252, 7
    %v254 = vsub.s32 1, %v253
    %v255 = vrot.slane %v246, %v254
    %258 = vmatprep.subr.mxu0 %v183
    %259 = vmatpush1.msra.mxu0 %v182
    %260 = vmatprep.subr.mxu0 %v185
    %261 = vmatpush1.msra.mxu0 %v184
    %262 = vmatprep.subr.mxu0 %v187
    %263 = vmatpush1.msra.mxu0 %v186
    %264 = vmatprep.subr.mxu0 %v189
    %265 = vmatpush1.msra.mxu0 %v188
    %266 = vmatprep.subr.mxu0 %v191
    %267 = vmatpush1.msra.mxu0 %v190
    %268 = vmatprep.subr.mxu0 %v193
    %269 = vmatpush1.msra.mxu0 %v192
    %270 = vmatprep.subr.mxu0 %v195
    %271 = vmatpush1.msra.mxu0 %v194
    %272 = vmatprep.subr.mxu0 %v197
    %273 = vmatpush1.msra.mxu0 %v196
    %274 = vmatprep.subr.mxu0 %v199
    %275 = vmatpush1.msra.mxu0 %v198
    %276 = vmatprep.subr.mxu0 %v201
    %277 = vmatpush1.msra.mxu0 %v200
    %278 = vmatprep.subr.mxu0 %v203
    %279 = vmatpush1.msra.mxu0 %v202
    %280 = vmatprep.subr.mxu0 %v205
    %281 = vmatpush1.msra.mxu0 %v204
    %282 = vmatprep.subr.mxu0 %v207
    %283 = vmatpush1.msra.mxu0 %v206
    %284 = vmatprep.subr.mxu0 %v209
    %285 = vmatpush1.msra.mxu0 %v208
    %286 = vmatprep.subr.mxu0 %v211
    %287 = vmatpush1.msra.mxu0 %v210
    %288 = vmatprep.subr.mxu0 %v213
    %289 = vmatpush1.msra.mxu0 %v212
    %290 = vmatprep.subr.mxu0 %v215
    %291 = vmatpush1.msra.mxu0 %v214
    %292 = vmatprep.subr.mxu0 %v217
    %293 = vmatpush1.msra.mxu0 %v216
    %294 = vmatprep.subr.mxu0 %v219
    %295 = vmatpush1.msra.mxu0 %v218
    %296 = vmatprep.subr.mxu0 %v221
    %297 = vmatpush1.msra.mxu0 %v220
    %298 = vmatprep.subr.mxu0 %v223
    %299 = vmatpush1.msra.mxu0 %v222
    %300 = vmatprep.subr.mxu0 %v225
    %301 = vmatpush1.msra.mxu0 %v224
    %302 = vmatprep.subr.mxu0 %v227
    %303 = vmatpush1.msra.mxu0 %v226
    %304 = vmatprep.subr.mxu0 %v229
    %305 = vmatpush1.msra.mxu0 %v228
    %306 = vmatprep.subr.mxu0 %v231
    %307 = vmatpush1.msra.mxu0 %v230
    %308 = vmatprep.subr.mxu0 %v233
    %309 = vmatpush1.msra.mxu0 %v232
    %310 = vmatprep.subr.mxu0 %v235
    %311 = vmatpush1.msra.mxu0 %v234
    %312 = vmatprep.subr.mxu0 %v237
    %313 = vmatpush1.msra.mxu0 %v236
    %314 = vmatprep.subr.mxu0 %v239
    %315 = vmatpush1.msra.mxu0 %v238
    %316 = vmatprep.subr.mxu0 %v241
    %317 = vmatpush1.msra.mxu0 %v240
    %318 = vmatprep.subr.mxu0 %v243
    %319 = vmatpush1.msra.mxu0 %v242
    %320 = vmatprep.subr.mxu0 %v245
    %321 = vmatpush1.msra.mxu0 %v244
    %322 = vmatprep.mubr.f32.mxu0 %v175
    %323 = vmatmul.mubr.f32.gmra.mrb[0].mxu0 %v174
    %v324 = vpop.f32.mrb[0].mxu0
    %v325 = vadd.f32 %v251, %v324
    %v326 = vpop.f32.mrb[0].mxu0
    %v327 = vadd.f32 %v255, %v326
    %328 = vmatprep.mubr.f32.mxu0 %v177
    %329 = vmatmul.mubr.f32.gmra.mrb[0].mxu0 %v176
    %v330 = vpop.f32.mrb[0].mxu0
    %v331 = vadd.f32 %v251, %v330
    %v332 = vpop.f32.mrb[0].mxu0
    %v333 = vadd.f32 %v255, %v332
    %334 = vmatprep.mubr.f32.mxu0 %v179
    %335 = vmatmul.mubr.f32.gmra.mrb[0].mxu0 %v178
    %v336 = vpop.f32.mrb[0].mxu0
    %v337 = vadd.f32 %v251, %v336
    %v338 = vpop.f32.mrb[0].mxu0
    %v339 = vadd.f32 %v255, %v338
    %340 = vmatprep.mubr.f32.mxu0 %v181
    %341 = vmatmul.mubr.f32.gmra.mrb[0].mxu0 %v180
    %v342 = vpop.f32.mrb[0].mxu0
    %v343 = vadd.f32 %v251, %v342
    %v344 = vpop.f32.mrb[0].mxu0
    %v345 = vadd.f32 %v255, %v344
    %346 = vdwg.mxu0
    %v347 = vmax.f32 %v325, 0.0
    %v348 = vmax.f32 %v327, 0.0
    %v349 = vmax.f32 %v331, 0.0
    %v350 = vmax.f32 %v333, 0.0
    %v351 = vmax.f32 %v337, 0.0
    %v352 = vmax.f32 %v339, 0.0
    %v353 = vmax.f32 %v343, 0.0
    %v354 = vmax.f32 %v345, 0.0
    %v355 = vld [vmem:[#allocation4] sm:$0xff]
    %v356 = vld [vmem:[#allocation4 + $0x8] sm:$0xff]
    %v357 = vld [vmem:[#allocation4 + $0x10] sm:$0xff]
    %v358 = vld [vmem:[#allocation4 + $0x18] sm:$0xff]
    %v359 = vld [vmem:[#allocation4 + $0x20] sm:$0xff]
    %v360 = vld [vmem:[#allocation4 + $0x28] sm:$0xff]
    %v361 = vld [vmem:[#allocation4 + $0x30] sm:$0xff]
    %v362 = vld [vmem:[#allocation4 + $0x38] sm:$0xff]
    %v363 = vld [vmem:[#allocation4 + $0x40] sm:$0xff]
    %v364 = vld [vmem:[#allocation4 + $0x48] sm:$0xff]
    %v365 = vld [vmem:[#allocation4 + $0x50] sm:$0xff]
    %v366 = vld [vmem:[#allocation4 + $0x58] sm:$0xff]
    %v367 = vld [vmem:[#allocation4 + $0x60] sm:$0xff]
    %v368 = vld [vmem:[#allocation4 + $0x68] sm:$0xff]
    %v369 = vld [vmem:[#allocation4 + $0x70] sm:$0xff]
    %v370 = vld [vmem:[#allocation4 + $0x78] sm:$0xff]
    %v371 = vld [vmem:[#allocation4 + $0x80] sm:$0xff]
    %v372 = vld [vmem:[#allocation4 + $0x88] sm:$0xff]
    %v373 = vld [vmem:[#allocation4 + $0x90] sm:$0xff]
    %v374 = vld [vmem:[#allocation4 + $0x98] sm:$0xff]
    %v375 = vld [vmem:[#allocation4 + $0xa0] sm:$0xff]
    %v376 = vld [vmem:[#allocation4 + $0xa8] sm:$0xff]
    %v377 = vld [vmem:[#allocation4 + $0xb0] sm:$0xff]
    %v378 = vld [vmem:[#allocation4 + $0xb8] sm:$0xff]
    %v379 = vld [vmem:[#allocation4 + $0xc0] sm:$0xff]
    %v380 = vld [vmem:[#allocation4 + $0xc8] sm:$0xff]
    %v381 = vld [vmem:[#allocation4 + $0xd0] sm:$0xff]
    %v382 = vld [vmem:[#allocation4 + $0xd8] sm:$0xff]
    %v383 = vld [vmem:[#allocation4 + $0xe0] sm:$0xff]
    %v384 = vld [vmem:[#allocation4 + $0xe8] sm:$0xff]
    %v385 = vld [vmem:[#allocation4 + $0xf0] sm:$0xff]
    %v386 = vld [vmem:[#allocation4 + $0xf8] sm:$0xff]
    %v387 = vld [vmem:[%s6] sm:$0x1]
    %v389 = vlaneseq
    %v390 = vshrl.u32 %v389, 7
    %v391 = vsub.s32 0, %v390
    %v392 = vrot.slane %v387, %v391
    %394 = vmatprep.subr.mxu0 0.0
    %395 = vmatpush1.msra.mxu0 %v355
    %396 = vmatprep.subr.mxu0 0.0
    %397 = vmatpush1.msra.mxu0 %v356
    %398 = vmatprep.subr.mxu0 0.0
    %399 = vmatpush1.msra.mxu0 %v357
    %400 = vmatprep.subr.mxu0 0.0
    %401 = vmatpush1.msra.mxu0 %v358
    %402 = vmatprep.subr.mxu0 0.0
    %403 = vmatpush1.msra.mxu0 %v359
    %404 = vmatprep.subr.mxu0 0.0
    %405 = vmatpush1.msra.mxu0 %v360
    %406 = vmatprep.subr.mxu0 0.0
    %407 = vmatpush1.msra.mxu0 %v361
    %408 = vmatprep.subr.mxu0 0.0
    %409 = vmatpush1.msra.mxu0 %v362
    %410 = vmatprep.subr.mxu0 0.0
    %411 = vmatpush1.msra.mxu0 %v363
    %412 = vmatprep.subr.mxu0 0.0
    %413 = vmatpush1.msra.mxu0 %v364
    %414 = vmatprep.subr.mxu0 0.0
    %415 = vmatpush1.msra.mxu0 %v365
    %416 = vmatprep.subr.mxu0 0.0
    %417 = vmatpush1.msra.mxu0 %v366
    %418 = vmatprep.subr.mxu0 0.0
    %419 = vmatpush1.msra.mxu0 %v367
    %420 = vmatprep.subr.mxu0 0.0
    %421 = vmatpush1.msra.mxu0 %v368
    %422 = vmatprep.subr.mxu0 0.0
    %423 = vmatpush1.msra.mxu0 %v369
    %424 = vmatprep.subr.mxu0 0.0
    %425 = vmatpush1.msra.mxu0 %v370
    %426 = vmatprep.subr.mxu0 0.0
    %427 = vmatpush1.msra.mxu0 %v371
    %428 = vmatprep.subr.mxu0 0.0
    %429 = vmatpush1.msra.mxu0 %v372
    %430 = vmatprep.subr.mxu0 0.0
    %431 = vmatpush1.msra.mxu0 %v373
    %432 = vmatprep.subr.mxu0 0.0
    %433 = vmatpush1.msra.mxu0 %v374
    %434 = vmatprep.subr.mxu0 0.0
    %435 = vmatpush1.msra.mxu0 %v375
    %436 = vmatprep.subr.mxu0 0.0
    %437 = vmatpush1.msra.mxu0 %v376
    %438 = vmatprep.subr.mxu0 0.0
    %439 = vmatpush1.msra.mxu0 %v377
    %440 = vmatprep.subr.mxu0 0.0
    %441 = vmatpush1.msra.mxu0 %v378
    %442 = vmatprep.subr.mxu0 0.0
    %443 = vmatpush1.msra.mxu0 %v379
    %444 = vmatprep.subr.mxu0 0.0
    %445 = vmatpush1.msra.mxu0 %v380
    %446 = vmatprep.subr.mxu0 0.0
    %447 = vmatpush1.msra.mxu0 %v381
    %448 = vmatprep.subr.mxu0 0.0
    %449 = vmatpush1.msra.mxu0 %v382
    %450 = vmatprep.subr.mxu0 0.0
    %451 = vmatpush1.msra.mxu0 %v383
    %452 = vmatprep.subr.mxu0 0.0
    %453 = vmatpush1.msra.mxu0 %v384
    %454 = vmatprep.subr.mxu0 0.0
    %455 = vmatpush1.msra.mxu0 %v385
    %456 = vmatprep.subr.mxu0 0.0
    %457 = vmatpush1.msra.mxu0 %v386
    %458 = vmatprep.mubr.f32.mxu0 %v348
    %459 = vmatmul.mubr.f32.gmra.mrb[0].mxu0 %v347
    %v460 = vpop.f32.mrb[0].mxu0
    %v461 = vadd.f32 %v392, %v460
    %v462 = vpop.f32.mrb[0].mxu0
    %463 = vmatprep.mubr.f32.mxu0 %v350
    %464 = vmatmul.mubr.f32.gmra.mrb[0].mxu0 %v349
    %v465 = vpop.f32.mrb[0].mxu0
    %v466 = vadd.f32 %v392, %v465
    %v467 = vpop.f32.mrb[0].mxu0
    %468 = vmatprep.mubr.f32.mxu0 %v352
    %469 = vmatmul.mubr.f32.gmra.mrb[0].mxu0 %v351
    %v470 = vpop.f32.mrb[0].mxu0
    %v471 = vadd.f32 %v392, %v470
    %v472 = vpop.f32.mrb[0].mxu0
    %473 = vmatprep.mubr.f32.mxu0 %v354
    %474 = vmatmul.mubr.f32.gmra.mrb[0].mxu0 %v353
    %v475 = vpop.f32.mrb[0].mxu0
    %v476 = vadd.f32 %v392, %v475
    %v477 = vpop.f32.mrb[0].mxu0
    %478 = vdwg.mxu0
    %v479 = vlaneseq
    %v480 = vand.u32 %v479, 127
    %vm481 = vcmp.ge.s32.totalorder %v480, 1
    %v482 = vmax.f32 %v461, 1e-06
    %v483 = vmax.f32 %v466, 1e-06
    %v484 = vmax.f32 %v471, 1e-06
    %v485 = vmax.f32 %v476, 1e-06
    %v486 = vmin.f32 %v482, 1.0
    %v487 = vmin.f32 %v483, 1.0
    %v488 = vmin.f32 %v484, 1.0
    %v489 = vmin.f32 %v485, 1.0
    %v490 = vsel %vm481, %v486, %v461
    %v491 = vsel %vm481, %v487, %v466
    %v492 = vsel %vm481, %v488, %v471
    %v493 = vsel %vm481, %v489, %v476
    %494 = vst [vmem:[%s7] sm:$0xff] %v490
    %495 = vst [vmem:[%s7 + $0x8] sm:$0xff] %v491
    %496 = vst [vmem:[%s7 + $0x10] sm:$0xff] %v492
    %497 = vst [vmem:[%s7 + $0x18] sm:$0xff] %v493
    // Predicated region
    $region38: #{actor_forward.1} parent=1 // pred_check
      _
    $region39: #{actor_forward.1} parent=1 // pred_check_branch
      %499 = sbr.rel (0) target = $region41
    $region40: #{actor_forward.1} parent=1 // pred_region
      _
    $region41: #{actor_forward.1} parent=1 // pred_fallthru
      _
    // Predicated region
    $region42: #{actor_forward.1} parent=1 // pred_check
      _
    $region43: #{actor_forward.1} parent=1 // pred_check_branch
      %501 = sbr.rel (0) target = $region45
    $region44: #{actor_forward.1} parent=1 // pred_region
      _
    $region45: #{actor_forward.1} parent=1 // pred_fallthru
      _
    %502 = vsyncpa [#allocation3], 1
    %503 = vsyncpa [#allocation5], 1

</llo_original>
